<compile_context>
chip_gen: v6e
topology: v6e:2x2x1
jax: 0.10.0
libtpu: 0.0.40
codegen_flags: <defaults>
</compile_context>

<pallas_src>
import jax
import jax.numpy as jnp
from jax import lax
from jax.experimental import pallas as pl
from jax.experimental.pallas import tpu as pltpu


_EPS = 1e-12            # F.normalize clamps the *norm* at 1e-12 ...
_EPS_SQ = _EPS * _EPS   # ... which equals clamping the sum-of-squares at 1e-24.


def _round_up(a, b):
    return ((a + b - 1) // b) * b


def _sublane_pack(dtype):
    # Rows per packed sublane group: 8 for 4-byte, 16 for bf16, 32 for int8/fp8.
    return max(8, 32 // jnp.dtype(dtype).itemsize)


def header_kernel_single_k(x_ref, w_ref, o_ref):
    """Whole contraction dim in one step: dot + fused column norm + store."""
    w = w_ref[...]
    acc = jnp.dot(x_ref[...], w, preferred_element_type=jnp.float32)
    sumsq = jnp.sum(jnp.square(w.astype(jnp.float32)), axis=0, keepdims=True)
    inv = lax.rsqrt(jnp.maximum(sumsq, _EPS_SQ))  # == 1 / max(||col||_2, 1e-12)
    o_ref[...] = (acc * inv).astype(o_ref.dtype)


def header_kernel_multi_k(x_ref, w_ref, o_ref, acc_ref, ss_ref):
    """K-tiled fallback: accumulate matmul + column sum-of-squares over k."""
    k = pl.program_id(2)

    @pl.when(k == 0)
    def _():
        acc_ref[...] = jnp.zeros_like(acc_ref)
        ss_ref[...] = jnp.zeros_like(ss_ref)

    w = w_ref[...]
    acc_ref[...] += jnp.dot(x_ref[...], w, preferred_element_type=jnp.float32)
    ss_ref[...] += jnp.sum(
        jnp.square(w.astype(jnp.float32)), axis=0, keepdims=True
    )

    @pl.when(k == pl.num_programs(2) - 1)
    def _():
        inv = lax.rsqrt(jnp.maximum(ss_ref[...], _EPS_SQ))
        o_ref[...] = (acc_ref[...] * inv).astype(o_ref.dtype)


def header_forward(x, fc, *, tm=256, tn=256,
                   vmem_budget_bytes=40 * 1024 * 1024):
    """x: (B, dim), fc: (dim, cN) -> (B, cN) = x @ normalize(fc, p=2, dim=0).

    The column norm is fused into the kernel, so fc is read from HBM exactly
    once (per N-tile revisit) and no separate normalization pass exists.
    """
    B, dim = x.shape
    dim_w, cN = fc.shape
    assert dim == dim_w, "x and fc contraction dims must match"

    out_dtype = jnp.promote_types(x.dtype, fc.dtype)
    out_itemsize = jnp.dtype(out_dtype).itemsize
    in_itemsize = max(jnp.dtype(x.dtype).itemsize, jnp.dtype(fc.dtype).itemsize)

    # ---------------- tile selection ----------------
    tm = min(tm, _round_up(B, _sublane_pack(x.dtype)))
    np_full = _round_up(cN, 128)
    tn = min(tn, np_full)
    kp_full = _round_up(dim, 128)

    # v7x megacore: if M has a single tile, keep >=2 tiles along N when possible
    # so both TensorCores get a "parallel" slice of the output.
    if _round_up(B, tm) // tm == 1 and np_full // tn < 2 and np_full >= 256:
        tn = _round_up((np_full + 1) // 2, 128)

    def vmem_need(tk):
        return (2 * (tm * tk + tk * tn) * in_itemsize   # double-buffered inputs
                + tm * tn * 4                           # f32 accumulator
                + _round_up(tn, 128) * 4                # sumsq scratch
                + 2 * tm * tn * out_itemsize)           # output tiles

    if vmem_need(kp_full) <= vmem_budget_bytes:
        tk = kp_full                                    # collapse K: one step
    else:
        # Largest 128-multiple divisor of Kp that fits -> no extra K padding.
        tk = 128
        for cand in (2048, 1024, 512, 256):
            if kp_full % cand == 0 and vmem_need(cand) <= vmem_budget_bytes:
                tk = cand
                break

    Mp = _round_up(B, tm)
    Np = _round_up(cN, tn)
    Kp = _round_up(dim, tk)

    # Pad only when actually required (avoids full HBM copies of x / fc).
    x_p = x if (Mp, Kp) == (B, dim) else jnp.pad(x, ((0, Mp - B), (0, Kp - dim)))
    fc_p = fc if (Kp, Np) == (dim, cN) else jnp.pad(
        fc, ((0, Kp - dim), (0, Np - cN))
    )

    n_k = Kp // tk
    vmem_limit = int(min(64 * 1024 * 1024,
                         max(32 * 1024 * 1024, vmem_need(tk) + (8 << 20))))
    cost = pl.CostEstimate(
        flops=2 * Mp * Np * Kp,
        transcendentals=Np * (Mp // tm),  # per-output-tile rsqrt epilogue
        bytes_accessed=(
            x_p.size * x_p.dtype.itemsize
            + fc_p.size * fc_p.dtype.itemsize
            + Mp * Np * out_itemsize
        ),
    )

    # TODO(synk): a tiny-shape XLA fast path (skip pallas_call for 1x1 grids)
    # would be faster for toy sizes, but is intentionally omitted so the Pallas
    # kernel is always exercised.
    if n_k == 1:
        out = pl.pallas_call(
            header_kernel_single_k,
            out_shape=jax.ShapeDtypeStruct((Mp, Np), out_dtype),
            grid_spec=pltpu.PrefetchScalarGridSpec(
                num_scalar_prefetch=0,
                grid=(Mp // tm, Np // tn),
                in_specs=[
                    pl.BlockSpec((tm, tk), lambda i, j: (i, 0)),   # x tile
                    pl.BlockSpec((tk, tn), lambda i, j: (0, j)),   # fc tile
                ],
                out_specs=pl.BlockSpec((tm, tn), lambda i, j: (i, j)),
            ),
            compiler_params=pltpu.CompilerParams(
                dimension_semantics=("parallel", "parallel"),
                vmem_limit_bytes=vmem_limit,
            ),
            cost_estimate=cost,
        )(x_p, fc_p)
    else:
        out = pl.pallas_call(
            header_kernel_multi_k,
            out_shape=jax.ShapeDtypeStruct((Mp, Np), out_dtype),
            grid_spec=pltpu.PrefetchScalarGridSpec(
                num_scalar_prefetch=0,
                grid=(Mp // tm, Np // tn, n_k),
                in_specs=[
                    pl.BlockSpec((tm, tk), lambda i, j, k: (i, k)),  # x tile
                    pl.BlockSpec((tk, tn), lambda i, j, k: (k, j)),  # fc tile
                ],
                out_specs=pl.BlockSpec((tm, tn), lambda i, j, k: (i, j)),
                scratch_shapes=[
                    pltpu.VMEM((tm, tn), jnp.float32),   # f32 accumulator
                    pltpu.VMEM((1, tn), jnp.float32),    # column sum-of-squares
                ],
            ),
            compiler_params=pltpu.CompilerParams(
                dimension_semantics=("parallel", "parallel", "arbitrary"),
                vmem_limit_bytes=vmem_limit,
            ),
            cost_estimate=cost,
        )(x_p, fc_p)

    if (Mp, Np) != (B, cN):
        out = out[:B, :cN]
    return out


if __name__ == "__main__":
    # Small shapes consistent with the module: Header(dim, cN), input (B, dim).
    B, dim, cN = 8, 32, 16

    key = jax.random.PRNGKey(0)
    kx, kw = jax.random.split(key)

    # Deterministic xavier_normal_-style init: std = sqrt(2 / (fan_in + fan_out))
    std = (2.0 / (dim + cN)) ** 0.5
    fc = jax.random.normal(kw, (dim, cN), dtype=jnp.float32) * std
    x = jax.random.normal(kx, (B, dim), dtype=jnp.float32)

    out = header_forward(x, fc)
    out = jax.block_until_ready(out)

    # Pure-JAX reference (matches F.normalize(fc, p=2, dim=0) then matmul).
    centers_ref = fc / jnp.maximum(
        jnp.linalg.norm(fc, axis=0, keepdims=True), 1e-12
    )
    ref = x @ centers_ref
    assert out.shape == (B, cN)
    assert jnp.allclose(out, ref, atol=1e-4, rtol=1e-4), (
        float(jnp.max(jnp.abs(out - ref)))
    )

    print("KERNEL_OK")
</pallas_src>

<mosaic_0001>
module attributes {stable_mosaic.version = 11 : i64} {
  func.func @header_kernel_single_k(%arg0: i32, %arg1: i32, %arg2: memref<8x128xf32, #tpu.memory_space<vmem>>, %arg3: memref<128x128xf32, #tpu.memory_space<vmem>>, %arg4: memref<8x128xf32, #tpu.memory_space<vmem>>) attributes {dimension_semantics = [#tpu.dimension_semantics<parallel>, #tpu.dimension_semantics<parallel>], iteration_bounds = array<i64: 1, 1>, scalar_prefetch = 0 : i64, scratch_operands = 0 : i64, tpu.core_type = #tpu.core_type<tc>, window_params = [{transform_indices = @transform_0, window_bounds = array<i64: 8, 128>}, {transform_indices = @transform_1, window_bounds = array<i64: 128, 128>}, {transform_indices = @transform_2, window_bounds = array<i64: 8, 128>}]} {
    %c0 = arith.constant 0 : index
    %c0_0 = arith.constant 0 : index
    %0 = vector.load %arg3[%c0, %c0_0] : memref<128x128xf32, #tpu.memory_space<vmem>>, vector<128x128xf32>
    %c0_1 = arith.constant 0 : index
    %c0_2 = arith.constant 0 : index
    %1 = vector.load %arg2[%c0_1, %c0_2] : memref<8x128xf32, #tpu.memory_space<vmem>>, vector<8x128xf32>
    %cst = arith.constant dense<0.000000e+00> : vector<8x128xf32>
    %2 = tpu.matmul %1, %0, %cst {dimension_numbers = #tpu.dot_dimension_numbers<[1], [0], [0], [1], [0, 0, 1, 1], [], []>} : vector<8x128xf32>, vector<128x128xf32>, vector<8x128xf32> -> vector<8x128xf32>
    %3 = arith.mulf %0, %0 : vector<128x128xf32>
    %cst_3 = arith.constant dense<0.000000e+00> : vector<128xf32>
    %4 = vector.multi_reduction <add>, %3, %cst_3 [0] : vector<128x128xf32> to vector<128xf32>
    %5 = vector.shape_cast %4 : vector<128xf32> to vector<1x128xf32>
    %cst_4 = arith.constant 1.000000e-24 : f32
    %6 = vector.broadcast %cst_4 : f32 to vector<1x128xf32>
    %7 = arith.maximumf %5, %6 : vector<1x128xf32>
    %8 = math.rsqrt %7 : vector<1x128xf32>
    %9 = vector.broadcast %8 : vector<1x128xf32> to vector<8x128xf32>
    %10 = arith.mulf %2, %9 : vector<8x128xf32>
    %c0_5 = arith.constant 0 : index
    %c0_6 = arith.constant 0 : index
    %11 = vector.load %arg4[%c0_5, %c0_6] : memref<8x128xf32, #tpu.memory_space<vmem>>, vector<8x128xf32>
    tpu.vector_store %arg4[%c0_5, %c0_6], %10 {strides = array<i32>} : memref<8x128xf32, #tpu.memory_space<vmem>>, vector<8x128xf32>,
    return
  }
  func.func @transform_0(%arg0: i32, %arg1: i32) -> (i32, i32) {
    %c0_i32 = arith.constant 0 : i32
    %c0_i32_0 = arith.constant 0 : i32
    return %arg0, %c0_i32 : i32, i32
  }
  func.func @transform_1(%arg0: i32, %arg1: i32) -> (i32, i32) {
    %c0_i32 = arith.constant 0 : i32
    %c0_i32_0 = arith.constant 0 : i32
    return %c0_i32, %arg1 : i32, i32
  }
  func.func @transform_2(%arg0: i32, %arg1: i32) -> (i32, i32) {
    %c0_i32 = arith.constant 0 : i32
    return %arg0, %arg1 : i32, i32
  }
}

</mosaic_0001>

<llo_original>
// kernel: tpu_custom_call.1
$region0: #{tpu_custom_call.1}
  #allocation0 [shape = 'u32[]', space=smem, size = 0x4, offset = 0x4, fixed_abs, tag = 'smem constant byte address 0x4 - core index']
  #allocation1 [shape = 'u32[144,128]{1,0:T(1,128)}', space=vmem, size = 0x12000, scoped, tag = 'internal scratch']
  %s0 = inlined_call_operand.hbm [shape: f32[8,128], index: 0, kind: input, shape index: {}]
  %s1 = inlined_call_operand.hbm [shape: f32[128,128], index: 1, kind: input, shape index: {}]
  %s2 = inlined_call_operand.hbm [shape: f32[8,128], index: 2, kind: output, shape index: {}]
  %s3 = sld [smem:[#allocation0]]
  $region26: #{tpu_custom_call.1} parent=0
    _
  %s5 = ssub.s32 1, %s3
  %s6 = scalar_select 0, %s5, %s3
  $region1: #{tpu_custom_call.1} parent=0
    #allocation2 [shape = 'u8[4096]{0}', space=vmem, size = 0x1000, scoped, tag = 'input window, operand 0, single buffered']
    #allocation3 [shape = 's32[1]{0}', space=sflag, size = 0x4, scoped, tag = 'scoped memory for tpu_custom_call.1']
    #allocation4 [shape = 's32[1]{0}', space=sflag, size = 0x4, scoped, tag = 'scoped memory for tpu_custom_call.1']
    #allocation5 [shape = 'u8[65536]{0}', space=vmem, size = 0x10000, scoped, tag = 'input window, operand 1, single buffered']
    #allocation6 [shape = 's32[1]{0}', space=sflag, size = 0x4, scoped, tag = 'scoped memory for tpu_custom_call.1']
    #allocation7 [shape = 'u8[4096]{0}', space=vmem, size = 0x1000, scoped, tag = 'output window, operand 0, single buffered']
    %7 = vsyncpa [#allocation3], 0
    %8 = vsyncpa [#allocation6], 0
    %9 = vsyncpa [#allocation4], 0
    // Predicated region
    $region2: #{tpu_custom_call.1} parent=1 // pred_check
      _
    $region3: #{tpu_custom_call.1} parent=1 // pred_check_branch
      %11 = sbr.rel (0) target = $region5
    $region4: #{tpu_custom_call.1} parent=1 // pred_region
      %s13 = ssub.s32 128, 128
      %14 = vsyncadd [#allocation3], %s13
      %s16 = sshll.u32 [#allocation2], 4
      %s17 = int_to_ptr.vmem [resolvable:$true] %s16
      %19 = dma.hbm_to_vmem [thread:$0]  %s0, 128, %s17, [#allocation3]
    $region5: #{tpu_custom_call.1} parent=1 // pred_fallthru
      _
    // Predicated region
    $region6: #{tpu_custom_call.1} parent=1 // pred_check
      _
    $region7: #{tpu_custom_call.1} parent=1 // pred_check_branch
      %21 = sbr.rel (0) target = $region9
    $region8: #{tpu_custom_call.1} parent=1 // pred_region
      %s23 = ssub.s32 2048, 2048
      %24 = vsyncadd [#allocation6], %s23
      %s25 = sshll.u32 [#allocation5], 4
      %s26 = int_to_ptr.vmem [resolvable:$true] %s25
      %31 = dma.hbm_to_vmem [thread:$0]  %s1, 2048, %s26, [#allocation6], 128, 128, 8
    $region9: #{tpu_custom_call.1} parent=1 // pred_fallthru
      _
    // Predicated region
    $region10: #{tpu_custom_call.1} parent=1 // pred_check
      _
    $region11: #{tpu_custom_call.1} parent=1 // pred_check_branch
      %33 = sbr.rel (0) target = $region13
    $region12: #{tpu_custom_call.1} parent=1 // pred_region
      %34 = dma.done [#allocation3], 128
    $region13: #{tpu_custom_call.1} parent=1 // pred_fallthru
      _
    // Predicated region
    $region14: #{tpu_custom_call.1} parent=1 // pred_check
      _
    $region15: #{tpu_custom_call.1} parent=1 // pred_check_branch
      %36 = sbr.rel (0) target = $region17
    $region16: #{tpu_custom_call.1} parent=1 // pred_region
      %37 = dma.done [#allocation6], 2048
    $region17: #{tpu_custom_call.1} parent=1 // pred_fallthru
      _
    %v38 = vld [vmem:[#allocation5] sm:$0xff]
    %v39 = vld [vmem:[#allocation5 + $0x8] sm:$0xff]
    %v40 = vld [vmem:[#allocation5 + $0x10] sm:$0xff]
    %v41 = vld [vmem:[#allocation5 + $0x18] sm:$0xff]
    %v42 = vld [vmem:[#allocation5 + $0x20] sm:$0xff]
    %v43 = vld [vmem:[#allocation5 + $0x28] sm:$0xff]
    %v44 = vld [vmem:[#allocation5 + $0x30] sm:$0xff]
    %v45 = vld [vmem:[#allocation5 + $0x38] sm:$0xff]
    %v46 = vld [vmem:[#allocation5 + $0x40] sm:$0xff]
    %v47 = vld [vmem:[#allocation5 + $0x48] sm:$0xff]
    %v48 = vld [vmem:[#allocation5 + $0x50] sm:$0xff]
    %v49 = vld [vmem:[#allocation5 + $0x58] sm:$0xff]
    %v50 = vld [vmem:[#allocation5 + $0x60] sm:$0xff]
    %v51 = vld [vmem:[#allocation5 + $0x68] sm:$0xff]
    %v52 = vld [vmem:[#allocation5 + $0x70] sm:$0xff]
    %v53 = vld [vmem:[#allocation5 + $0x78] sm:$0xff]
    %v54 = vld [vmem:[#allocation2] sm:$0xff]
    %55 = vmatprep.subr.mxu0 0.0
    %56 = vmatpush1.msra.mxu0 %v53
    %57 = vmatprep.subr.mxu0 0.0
    %58 = vmatpush1.msra.mxu0 %v52
    %59 = vmatprep.subr.mxu0 0.0
    %60 = vmatpush1.msra.mxu0 %v51
    %61 = vmatprep.subr.mxu0 0.0
    %62 = vmatpush1.msra.mxu0 %v50
    %63 = vmatprep.subr.mxu0 0.0
    %64 = vmatpush1.msra.mxu0 %v49
    %65 = vmatprep.subr.mxu0 0.0
    %66 = vmatpush1.msra.mxu0 %v48
    %67 = vmatprep.subr.mxu0 0.0
    %68 = vmatpush1.msra.mxu0 %v47
    %69 = vmatprep.subr.mxu0 0.0
    %70 = vmatpush1.msra.mxu0 %v46
    %71 = vmatprep.subr.mxu0 0.0
    %72 = vmatpush1.msra.mxu0 %v45
    %73 = vmatprep.subr.mxu0 0.0
    %74 = vmatpush1.msra.mxu0 %v44
    %75 = vmatprep.subr.mxu0 0.0
    %76 = vmatpush1.msra.mxu0 %v43
    %77 = vmatprep.subr.mxu0 0.0
    %78 = vmatpush1.msra.mxu0 %v42
    %79 = vmatprep.subr.mxu0 0.0
    %80 = vmatpush1.msra.mxu0 %v41
    %81 = vmatprep.subr.mxu0 0.0
    %82 = vmatpush1.msra.mxu0 %v40
    %83 = vmatprep.subr.mxu0 0.0
    %84 = vmatpush1.msra.mxu0 %v39
    %85 = vmatprep.subr.mxu0 0.0
    %86 = vmatpush1.msra.mxu0 %v38
    %87 = vmatprep.subr.mxu0 0.0
    %88 = vmatpush2.msra.mxu0 0.0
    %89 = vmatprep.subr.mxu0 0.0
    %90 = vmatpush2.msra.mxu0 0.0
    %91 = vmatprep.subr.mxu0 0.0
    %92 = vmatpush2.msra.mxu0 0.0
    %93 = vmatprep.subr.mxu0 0.0
    %94 = vmatpush2.msra.mxu0 0.0
    %95 = vmatprep.subr.mxu0 0.0
    %96 = vmatpush2.msra.mxu0 0.0
    %97 = vmatprep.subr.mxu0 0.0
    %98 = vmatpush2.msra.mxu0 0.0
    %99 = vmatprep.subr.mxu0 0.0
    %100 = vmatpush2.msra.mxu0 0.0
    %101 = vmatprep.subr.mxu0 0.0
    %102 = vmatpush2.msra.mxu0 0.0
    %103 = vmatprep.subr.mxu0 0.0
    %104 = vmatpush2.msra.mxu0 0.0
    %105 = vmatprep.subr.mxu0 0.0
    %106 = vmatpush2.msra.mxu0 0.0
    %107 = vmatprep.subr.mxu0 0.0
    %108 = vmatpush2.msra.mxu0 0.0
    %109 = vmatprep.subr.mxu0 0.0
    %110 = vmatpush2.msra.mxu0 0.0
    %111 = vmatprep.subr.mxu0 0.0
    %112 = vmatpush2.msra.mxu0 0.0
    %113 = vmatprep.subr.mxu0 0.0
    %114 = vmatpush2.msra.mxu0 0.0
    %115 = vmatprep.subr.mxu0 0.0
    %116 = vmatpush2.msra.mxu0 0.0
    %117 = vmatprep.subr.mxu0 0.0
    %118 = vmatpush2.msra.mxu0 0.0
    %119 = vmatprep.mubr.f32.mxu0 0.0
    %120 = vmatmul.mubr.f32.gmra.mxu0 %v54
    %v121 = vpop.f32.mrf.mxu0
    %v122 = vadd.f32 0.0, %v121
    %v123 = vpop.f32.mrf.mxu0
    %124 = vdwg.mxu0
    %v125 = vmul.f32 %v38, %v38
    %v126 = vmul.f32 %v39, %v39
    %v127 = vmul.f32 %v40, %v40
    %v128 = vmul.f32 %v41, %v41
    %v129 = vmul.f32 %v42, %v42
    %v130 = vmul.f32 %v43, %v43
    %v131 = vmul.f32 %v44, %v44
    %v132 = vmul.f32 %v45, %v45
    %v133 = vmul.f32 %v46, %v46
    %v134 = vmul.f32 %v47, %v47
    %v135 = vmul.f32 %v48, %v48
    %v136 = vmul.f32 %v49, %v49
    %v137 = vmul.f32 %v50, %v50
    %v138 = vmul.f32 %v51, %v51
    %v139 = vmul.f32 %v52, %v52
    %v140 = vmul.f32 %v53, %v53
    %v141 = vadd.f32 %v125, %v126
    %v142 = vadd.f32 %v141, %v127
    %v143 = vadd.f32 %v142, %v128
    %v144 = vadd.f32 %v143, %v129
    %v145 = vadd.f32 %v144, %v130
    %v146 = vadd.f32 %v145, %v131
    %v147 = vadd.f32 %v146, %v132
    %v148 = vadd.f32 %v147, %v133
    %v149 = vadd.f32 %v148, %v134
    %v150 = vadd.f32 %v149, %v135
    %v151 = vadd.f32 %v150, %v136
    %v152 = vadd.f32 %v151, %v137
    %v153 = vadd.f32 %v152, %v138
    %v154 = vadd.f32 %v153, %v139
    %v155 = vadd.f32 %v154, %v140
    %v156 = vrot.slane %v155, 4
    %v157 = vadd.f32 %v155, %v156
    %v158 = vrot.slane %v157, 2
    %v159 = vadd.f32 %v157, %v158
    %v160 = vrot.slane %v159, 1
    %v161 = vadd.f32 %v159, %v160
    %v162 = vmax.f32 %v161, 1e-24
    %v163 = vrsqrt.pop %v162
    %v164 = vmul.f32 %v122, %v163
    %165 = vst [vmem:[#allocation7] sm:$0xff] %v164
    // Predicated region
    $region18: #{tpu_custom_call.1} parent=1 // pred_check
      _
    $region19: #{tpu_custom_call.1} parent=1 // pred_check_branch
      %167 = sbr.rel (0) target = $region21
    $region20: #{tpu_custom_call.1} parent=1 // pred_region
      %s169 = ssub.s32 128, 128
      %170 = vsyncadd [#allocation4], %s169
      %s172 = sshll.u32 [#allocation7], 4
      %s173 = int_to_ptr.vmem [resolvable:$true] %s172
      %175 = dma.vmem_to_hbm [thread:$0]  %s173, 128, %s2, [#allocation4]
    $region21: #{tpu_custom_call.1} parent=1 // pred_fallthru
      _
    // Predicated region
    $region22: #{tpu_custom_call.1} parent=1 // pred_check
      _
    $region23: #{tpu_custom_call.1} parent=1 // pred_check_branch
      %177 = sbr.rel (0) target = $region25
    $region24: #{tpu_custom_call.1} parent=1 // pred_region
      %178 = dma.done [#allocation4], 128
    $region25: #{tpu_custom_call.1} parent=1 // pred_fallthru
      _
    %179 = vsyncpa [#allocation3], 1
    %180 = vsyncpa [#allocation6], 1
    %181 = vsyncpa [#allocation4], 1

</llo_original>
